<compile_context>
chip_gen: v6e
topology: v6e:2x2x1
jax: 0.10.0
libtpu: 0.0.40
codegen_flags: <defaults>
</compile_context>

<pallas_src>
import functools
import math

import jax
import jax.numpy as jnp
from jax.experimental import pallas as pl
from jax.experimental.pallas import tpu as pltpu


_VMEM_LIMIT = 48 * 1024 * 1024  # safe on v5e/v6e (128 MiB phys) and v7x (64 MiB phys)


def _pick_tile(dim, target):
    """Largest clean tile: full dim if small / indivisible, else the target."""
    if dim <= target:
        return dim
    if dim % target == 0:
        return target
    return dim


# --------------------------------------------------------------------------
# Linear layer:  y = x @ W^T + b   (torch.nn.Linear weight layout: (out, in))
# --------------------------------------------------------------------------
def _linear_kernel(x_ref, w_ref, b_ref, o_ref, acc_ref):
    k = pl.program_id(2)

    @pl.when(k == 0)
    def _():
        acc_ref[...] = jnp.zeros_like(acc_ref)

    acc_ref[...] += jnp.dot(
        x_ref[...], w_ref[...], preferred_element_type=jnp.float32
    )

    @pl.when(k == pl.num_programs(2) - 1)
    def _():
        o_ref[...] = (acc_ref[...] + b_ref[...].astype(jnp.float32)).astype(
            o_ref.dtype
        )


def linear(x2d, weight, bias, *, tm=256, tn=256, tk=512):
    """x2d: (M, K), weight: (N, K), bias: (N,) -> (M, N)."""
    M, K = x2d.shape
    N = weight.shape[0]
    wt = weight.T  # (K, N), contraction axis leading -> lane-dense output
    b2d = bias.reshape(1, N)

    bm = _pick_tile(M, tm)
    bn = _pick_tile(N, tn)
    bk = _pick_tile(K, tk)
    grid = (M // bm, N // bn, K // bk)

    itemsize = x2d.dtype.itemsize
    cost = pl.CostEstimate(
        flops=2 * M * N * K,
        transcendentals=0,
        bytes_accessed=(M * K + K * N + M * N + N) * itemsize,
    )

    return pl.pallas_call(
        _linear_kernel,
        out_shape=jax.ShapeDtypeStruct((M, N), x2d.dtype),
        grid_spec=pltpu.PrefetchScalarGridSpec(
            num_scalar_prefetch=0,
            grid=grid,
            in_specs=[
                pl.BlockSpec((bm, bk), lambda i, j, k: (i, k)),
                pl.BlockSpec((bk, bn), lambda i, j, k: (k, j)),
                pl.BlockSpec((1, bn), lambda i, j, k: (0, j)),
            ],
            out_specs=pl.BlockSpec((bm, bn), lambda i, j, k: (i, j)),
            scratch_shapes=[pltpu.VMEM((bm, bn), jnp.float32)],
        ),
        compiler_params=pltpu.CompilerParams(
            dimension_semantics=("parallel", "parallel", "arbitrary"),
            vmem_limit_bytes=_VMEM_LIMIT,
        ),
        cost_estimate=cost,
    )(x2d, wt, b2d)


# --------------------------------------------------------------------------
# Scaled dot-product attention with mask (flash-style online softmax).
# Matches torch: scores = QK^T/sqrt(d_k); masked_fill(mask==0, -1e9); softmax; @V
# --------------------------------------------------------------------------
def _attn_kernel(q_ref, k_ref, v_ref, mask_ref, o_ref, m_sc, l_sc, acc_sc, *, scale):
    ki = pl.program_id(2)

    @pl.when(ki == 0)
    def _():
        m_sc[...] = jnp.full_like(m_sc, -jnp.inf)
        l_sc[...] = jnp.zeros_like(l_sc)
        acc_sc[...] = jnp.zeros_like(acc_sc)

    q = q_ref[0].astype(jnp.float32)  # (tq, dk)
    k = k_ref[0].astype(jnp.float32)  # (tk, dk)
    v = v_ref[0]                      # (tk, dk)

    s = jnp.dot(q, k.T, preferred_element_type=jnp.float32) * scale  # (tq, tk)
    s = jnp.where(mask_ref[0] == 0, jnp.float32(-1e9), s)

    m_prev = m_sc[...]                                    # (tq, 1)
    m_new = jnp.maximum(m_prev, s.max(axis=-1, keepdims=True))
    alpha = jnp.exp(m_prev - m_new)
    p = jnp.exp(s - m_new)

    l_sc[...] = alpha * l_sc[...] + p.sum(axis=-1, keepdims=True)
    acc_sc[...] = alpha * acc_sc[...] + jnp.dot(
        p.astype(v.dtype), v, preferred_element_type=jnp.float32
    )
    m_sc[...] = m_new

    @pl.when(ki == pl.num_programs(2) - 1)
    def _():
        o_ref[0] = (acc_sc[...] / l_sc[...]).astype(o_ref.dtype)


def attention(q_bh, k_bh, v_bh, mask_bh, *, tq=128, tk=128):
    """q_bh: (BH, Sq, dk), k_bh/v_bh: (BH, Sk, dk), mask_bh: (BH, Sq, Sk) int32."""
    BH, Sq, dk = q_bh.shape
    Sk = k_bh.shape[1]

    bq = _pick_tile(Sq, tq)
    bk = _pick_tile(Sk, tk)
    grid = (BH, Sq // bq, Sk // bk)
    scale = 1.0 / math.sqrt(dk)

    itemsize = q_bh.dtype.itemsize
    cost = pl.CostEstimate(
        flops=4 * BH * Sq * Sk * dk,
        transcendentals=BH * Sq * Sk,
        bytes_accessed=BH * (2 * Sq * dk + 2 * Sk * dk) * itemsize
        + BH * Sq * Sk * 4,
    )

    return pl.pallas_call(
        functools.partial(_attn_kernel, scale=scale),
        out_shape=jax.ShapeDtypeStruct((BH, Sq, dk), q_bh.dtype),
        grid_spec=pltpu.PrefetchScalarGridSpec(
            num_scalar_prefetch=0,
            grid=grid,
            in_specs=[
                pl.BlockSpec((1, bq, dk), lambda b, qi, ki: (b, qi, 0)),
                pl.BlockSpec((1, bk, dk), lambda b, qi, ki: (b, ki, 0)),
                pl.BlockSpec((1, bk, dk), lambda b, qi, ki: (b, ki, 0)),
                pl.BlockSpec((1, bq, bk), lambda b, qi, ki: (b, qi, ki)),
            ],
            out_specs=pl.BlockSpec((1, bq, dk), lambda b, qi, ki: (b, qi, 0)),
            scratch_shapes=[
                pltpu.VMEM((bq, 1), jnp.float32),
                pltpu.VMEM((bq, 1), jnp.float32),
                pltpu.VMEM((bq, dk), jnp.float32),
            ],
        ),
        compiler_params=pltpu.CompilerParams(
            dimension_semantics=("parallel", "parallel", "arbitrary"),
            vmem_limit_bytes=_VMEM_LIMIT,
        ),
        cost_estimate=cost,
    )(q_bh, k_bh, v_bh, mask_bh)


# --------------------------------------------------------------------------
# Full block forward (= MultiHeadAttentionBlock.forward, inference mode).
# --------------------------------------------------------------------------
def multi_head_attention_block(q, k, v, mask, params, h):
    """q,k,v: (B, S, d_model); mask: None or broadcastable to (B, h, Sq, Sk), 0 = masked."""
    B, Sq, D = q.shape
    Sk = k.shape[1]
    assert D % h == 0, "d_model is not divisible by h"
    d_k = D // h

    def proj(x, w, b):
        M = x.shape[0] * x.shape[1]
        return linear(x.reshape(M, D), w, b).reshape(x.shape[0], x.shape[1], D)

    Q = proj(q, params["wq"], params["bq"])
    K = proj(k, params["wk"], params["bk"])
    V = proj(v, params["wv"], params["bv"])

    # (B, S, D) -> (B, H, S, d_k) -> (B*H, S, d_k)   (layout plumbing stays in JAX)
    Qh = Q.reshape(B, Sq, h, d_k).transpose(0, 2, 1, 3).reshape(B * h, Sq, d_k)
    Kh = K.reshape(B, Sk, h, d_k).transpose(0, 2, 1, 3).reshape(B * h, Sk, d_k)
    Vh = V.reshape(B, Sk, h, d_k).transpose(0, 2, 1, 3).reshape(B * h, Sk, d_k)

    if mask is None:
        mask_bh = jnp.ones((B * h, Sq, Sk), dtype=jnp.int32)
    else:
        mask_bh = (
            jnp.broadcast_to(jnp.asarray(mask), (B, h, Sq, Sk))
            .astype(jnp.int32)
            .reshape(B * h, Sq, Sk)
        )

    # TODO(synk): nn.Dropout on attention probabilities is treated as inference-mode
    # identity (could be added with pltpu.prng_seed/prng_random_bits if training is needed).
    x = attention(Qh, Kh, Vh, mask_bh)  # (B*H, Sq, d_k)

    x = x.reshape(B, h, Sq, d_k).transpose(0, 2, 1, 3).reshape(B * Sq, D)
    out = linear(x, params["wo"], params["bo"]).reshape(B, Sq, D)
    # TODO(synk): attention_viz(...) side-effect when is_cross=True has no Pallas equivalent.
    return out


# --------------------------------------------------------------------------
# Pure-JAX reference (mirrors the PyTorch forward exactly, eval mode).
# --------------------------------------------------------------------------
def ref_forward(q, k, v, mask, params, h):
    B, Sq, D = q.shape
    Sk = k.shape[1]
    d_k = D // h

    def lin(x, w, b):
        return x @ w.T + b

    Q = lin(q, params["wq"], params["bq"]).reshape(B, Sq, h, d_k).transpose(0, 2, 1, 3)
    K = lin(k, params["wk"], params["bk"]).reshape(B, Sk, h, d_k).transpose(0, 2, 1, 3)
    V = lin(v, params["wv"], params["bv"]).reshape(B, Sk, h, d_k).transpose(0, 2, 1, 3)

    scores = jnp.einsum("bhqd,bhkd->bhqk", Q, K) / math.sqrt(d_k)
    if mask is not None:
        m = jnp.broadcast_to(jnp.asarray(mask), (B, h, Sq, Sk))
        scores = jnp.where(m == 0, jnp.float32(-1e9), scores)
    p = jax.nn.softmax(scores, axis=-1)
    x = jnp.einsum("bhqk,bhkd->bhqd", p, V)
    x = x.transpose(0, 2, 1, 3).reshape(B, Sq, D)
    return lin(x, params["wo"], params["bo"])


if __name__ == "__main__":
    key = jax.random.PRNGKey(0)
    B, S, D, H = 2, 8, 32, 4  # batch=2, seq=8, d_model=32, h=4 (d_k=8), dropout=0.0

    keys = jax.random.split(key, 11)
    w_scale = 0.1
    q = jax.random.normal(keys[0], (B, S, D), dtype=jnp.float32)
    k = jax.random.normal(keys[1], (B, S, D), dtype=jnp.float32)
    v = jax.random.normal(keys[2], (B, S, D), dtype=jnp.float32)
    params = {
        "wq": jax.random.normal(keys[3], (D, D), dtype=jnp.float32) * w_scale,
        "bq": jax.random.normal(keys[4], (D,), dtype=jnp.float32) * w_scale,
        "wk": jax.random.normal(keys[5], (D, D), dtype=jnp.float32) * w_scale,
        "bk": jax.random.normal(keys[6], (D,), dtype=jnp.float32) * w_scale,
        "wv": jax.random.normal(keys[7], (D, D), dtype=jnp.float32) * w_scale,
        "bv": jax.random.normal(keys[8], (D,), dtype=jnp.float32) * w_scale,
        "wo": jax.random.normal(keys[9], (D, D), dtype=jnp.float32) * w_scale,
        "bo": jax.random.normal(keys[10], (D,), dtype=jnp.float32) * w_scale,
    }
    # causal mask, broadcast over batch and heads (0 = masked out, as in torch masked_fill)
    mask = jnp.tril(jnp.ones((S, S), dtype=jnp.int32)).reshape(1, 1, S, S)

    out = multi_head_attention_block(q, k, v, mask, params, H)
    out = jax.block_until_ready(out)

    ref = ref_forward(q, k, v, mask, params, H)
    assert out.shape == ref.shape and out.dtype == ref.dtype
    max_err = float(jnp.max(jnp.abs(out - ref)))
    assert jnp.allclose(out, ref, atol=2e-4, rtol=2e-4), f"max_err={max_err}"

    print("KERNEL_OK")
</pallas_src>

<mosaic_0001>
module attributes {stable_mosaic.version = 11 : i64} {
  func.func @_linear_kernel(%arg0: i32, %arg1: i32, %arg2: i32, %arg3: memref<16x32xf32, #tpu.memory_space<vmem>>, %arg4: memref<32x32xf32, #tpu.memory_space<vmem>>, %arg5: memref<1x32xf32, #tpu.memory_space<vmem>>, %arg6: memref<16x32xf32, #tpu.memory_space<vmem>>, %arg7: memref<16x32xf32, #tpu.memory_space<vmem>>) attributes {dimension_semantics = [#tpu.dimension_semantics<parallel>, #tpu.dimension_semantics<parallel>, #tpu.dimension_semantics<arbitrary>], iteration_bounds = array<i64: 1, 1, 1>, scalar_prefetch = 0 : i64, scratch_operands = 1 : i64, tpu.core_type = #tpu.core_type<tc>, window_params = [{transform_indices = @transform_0, window_bounds = array<i64: 16, 32>}, {transform_indices = @transform_1, window_bounds = array<i64: 32, 32>}, {transform_indices = @transform_2, window_bounds = array<i64: 1, 32>}, {transform_indices = @transform_3, window_bounds = array<i64: 16, 32>}]} {
    %c0_i32 = arith.constant 0 : i32
    %0 = arith.cmpi eq, %arg2, %c0_i32 : i32
    %1 = arith.extui %0 : i1 to i32
    %c0_i32_0 = arith.constant 0 : i32
    %2 = arith.cmpi ne, %1, %c0_i32_0 : i32
    scf.if %2 {
      %cst_10 = arith.constant 0.000000e+00 : f32
      %12 = vector.broadcast %cst_10 : f32 to vector<16x32xf32>
      %c0_11 = arith.constant 0 : index
      %c0_12 = arith.constant 0 : index
      %13 = vector.load %arg7[%c0_11, %c0_12] : memref<16x32xf32, #tpu.memory_space<vmem>>, vector<16x32xf32>
      tpu.vector_store %arg7[%c0_11, %c0_12], %12 {strides = array<i32>} : memref<16x32xf32, #tpu.memory_space<vmem>>, vector<16x32xf32>,
    } else {
    }
    %c0 = arith.constant 0 : index
    %c0_1 = arith.constant 0 : index
    %3 = vector.load %arg7[%c0, %c0_1] : memref<16x32xf32, #tpu.memory_space<vmem>>, vector<16x32xf32>
    %c0_2 = arith.constant 0 : index
    %c0_3 = arith.constant 0 : index
    %4 = vector.load %arg3[%c0_2, %c0_3] : memref<16x32xf32, #tpu.memory_space<vmem>>, vector<16x32xf32>
    %c0_4 = arith.constant 0 : index
    %c0_5 = arith.constant 0 : index
    %5 = vector.load %arg4[%c0_4, %c0_5] : memref<32x32xf32, #tpu.memory_space<vmem>>, vector<32x32xf32>
    %cst = arith.constant dense<0.000000e+00> : vector<16x32xf32>
    %6 = tpu.matmul %4, %5, %cst {dimension_numbers = #tpu.dot_dimension_numbers<[1], [0], [0], [1], [0, 0, 1, 1], [], []>} : vector<16x32xf32>, vector<32x32xf32>, vector<16x32xf32> -> vector<16x32xf32>
    %7 = arith.addf %3, %6 : vector<16x32xf32>
    %c0_6 = arith.constant 0 : index
    %c0_7 = arith.constant 0 : index
    %8 = vector.load %arg7[%c0_6, %c0_7] : memref<16x32xf32, #tpu.memory_space<vmem>>, vector<16x32xf32>
    tpu.vector_store %arg7[%c0_6, %c0_7], %7 {strides = array<i32>} : memref<16x32xf32, #tpu.memory_space<vmem>>, vector<16x32xf32>,
    %c0_i32_8 = arith.constant 0 : i32
    %9 = arith.cmpi eq, %arg2, %c0_i32_8 : i32
    %10 = arith.extui %9 : i1 to i32
    %c0_i32_9 = arith.constant 0 : i32
    %11 = arith.cmpi ne, %10, %c0_i32_9 : i32
    scf.if %11 {
      %c0_10 = arith.constant 0 : index
      %c0_11 = arith.constant 0 : index
      %12 = vector.load %arg7[%c0_10, %c0_11] : memref<16x32xf32, #tpu.memory_space<vmem>>, vector<16x32xf32>
      %c0_12 = arith.constant 0 : index
      %c0_13 = arith.constant 0 : index
      %13 = vector.load %arg5[%c0_12, %c0_13] : memref<1x32xf32, #tpu.memory_space<vmem>>, vector<1x32xf32>
      %14 = vector.broadcast %13 : vector<1x32xf32> to vector<16x32xf32>
      %15 = arith.addf %12, %14 : vector<16x32xf32>
      %c0_14 = arith.constant 0 : index
      %c0_15 = arith.constant 0 : index
      %16 = vector.load %arg6[%c0_14, %c0_15] : memref<16x32xf32, #tpu.memory_space<vmem>>, vector<16x32xf32>
      tpu.vector_store %arg6[%c0_14, %c0_15], %15 {strides = array<i32>} : memref<16x32xf32, #tpu.memory_space<vmem>>, vector<16x32xf32>,
    } else {
    }
    return
  }
  func.func @transform_0(%arg0: i32, %arg1: i32, %arg2: i32) -> (i32, i32) {
    %c0_i32 = arith.constant 0 : i32
    return %arg0, %arg2 : i32, i32
  }
  func.func @transform_1(%arg0: i32, %arg1: i32, %arg2: i32) -> (i32, i32) {
    %c0_i32 = arith.constant 0 : i32
    return %arg2, %arg1 : i32, i32
  }
  func.func @transform_2(%arg0: i32, %arg1: i32, %arg2: i32) -> (i32, i32) {
    %c0_i32 = arith.constant 0 : i32
    %c0_i32_0 = arith.constant 0 : i32
    return %c0_i32, %arg1 : i32, i32
  }
  func.func @transform_3(%arg0: i32, %arg1: i32, %arg2: i32) -> (i32, i32) {
    %c0_i32 = arith.constant 0 : i32
    return %arg0, %arg1 : i32, i32
  }
}

</mosaic_0001>

<llo_original>
// kernel: tpu_custom_call.1
$region0: #{tpu_custom_call.1}
  #allocation0 [shape = 'u32[]', space=smem, size = 0x4, offset = 0x4, fixed_abs, tag = 'smem constant byte address 0x4 - core index']
  #allocation1 [shape = 'u32[144,128]{1,0:T(1,128)}', space=vmem, size = 0x12000, scoped, tag = 'internal scratch']
  #allocation2 [shape = 'f32[16,32]{1,0:T(8,128)}', space=vmem, size = 0x2000, scoped, tag = 'scratch operand']
  %s0 = inlined_call_operand.hbm [shape: f32[16,32], index: 0, kind: input, shape index: {}]
  %s1 = inlined_call_operand.hbm [shape: f32[32,32], index: 1, kind: input, shape index: {}]
  %s2 = inlined_call_operand.vmem [shape: f32[1,32], index: 2, kind: input, shape index: {}]
  %s3 = inlined_call_operand.hbm [shape: f32[16,32], index: 3, kind: output, shape index: {}]
  %s4 = sld [smem:[#allocation0]]
  $region38: #{tpu_custom_call.1} parent=0
    _
  %s6 = ssub.s32 1, %s4
  %s7 = scalar_select 0, %s6, %s4
  $region1: #{tpu_custom_call.1} parent=0
    #allocation3 [shape = 'u8[8192]{0}', space=vmem, size = 0x2000, scoped, tag = 'input window, operand 0, single buffered']
    #allocation4 [shape = 's32[1]{0}', space=sflag, size = 0x4, scoped, tag = 'scoped memory for tpu_custom_call.1']
    #allocation5 [shape = 's32[1]{0}', space=sflag, size = 0x4, scoped, tag = 'scoped memory for tpu_custom_call.1']
    #allocation6 [shape = 'u8[16384]{0}', space=vmem, size = 0x4000, scoped, tag = 'input window, operand 1, single buffered']
    #allocation7 [shape = 's32[1]{0}', space=sflag, size = 0x4, scoped, tag = 'scoped memory for tpu_custom_call.1']
    #allocation8 [shape = 'u8[8192]{0}', space=vmem, size = 0x2000, scoped, tag = 'output window, operand 0, single buffered']
    %8 = vsyncpa [#allocation4], 0
    %9 = vsyncpa [#allocation7], 0
    %10 = vsyncpa [#allocation5], 0
    // Predicated region
    $region2: #{tpu_custom_call.1} parent=1 // pred_check
      _
    $region3: #{tpu_custom_call.1} parent=1 // pred_check_branch
      %12 = sbr.rel (0) target = $region5
    $region4: #{tpu_custom_call.1} parent=1 // pred_region
      %s14 = ssub.s32 256, 256
      %15 = vsyncadd [#allocation4], %s14
      %s16 = sshll.u32 [#allocation3], 4
      %s17 = int_to_ptr.vmem [resolvable:$true] %s16
      %22 = dma.hbm_to_vmem [thread:$0]  %s0, 256, %s17, [#allocation4], 128, 128, 8
    $region5: #{tpu_custom_call.1} parent=1 // pred_fallthru
      _
    // Predicated region
    $region6: #{tpu_custom_call.1} parent=1 // pred_check
      _
    $region7: #{tpu_custom_call.1} parent=1 // pred_check_branch
      %24 = sbr.rel (0) target = $region9
    $region8: #{tpu_custom_call.1} parent=1 // pred_region
      %s26 = ssub.s32 512, 512
      %27 = vsyncadd [#allocation7], %s26
      %s28 = sshll.u32 [#allocation6], 4
      %s29 = int_to_ptr.vmem [resolvable:$true] %s28
      %34 = dma.hbm_to_vmem [thread:$0]  %s1, 512, %s29, [#allocation7], 128, 128, 8
    $region9: #{tpu_custom_call.1} parent=1 // pred_fallthru
      _
    // Predicated region
    $region10: #{tpu_custom_call.1} parent=1 // pred_check
      _
    $region11: #{tpu_custom_call.1} parent=1 // pred_check_branch
      %36 = sbr.rel (0) target = $region13
    $region12: #{tpu_custom_call.1} parent=1 // pred_region
      _
    $region13: #{tpu_custom_call.1} parent=1 // pred_fallthru
      _
    // Predicated region
    $region14: #{tpu_custom_call.1} parent=1 // pred_check
      _
    $region15: #{tpu_custom_call.1} parent=1 // pred_check_branch
      %38 = sbr.rel (0) target = $region17
    $region16: #{tpu_custom_call.1} parent=1 // pred_region
      %39 = dma.done [#allocation4], 256
    $region17: #{tpu_custom_call.1} parent=1 // pred_fallthru
      _
    // Predicated region
    $region18: #{tpu_custom_call.1} parent=1 // pred_check
      _
    $region19: #{tpu_custom_call.1} parent=1 // pred_check_branch
      %41 = sbr.rel (0) target = $region21
    $region20: #{tpu_custom_call.1} parent=1 // pred_region
      %42 = dma.done [#allocation7], 512
    $region21: #{tpu_custom_call.1} parent=1 // pred_fallthru
      _
    %p43 = scmp.eq.s32.totalorder 0, 0
    // Predicated region
    $region22: #{tpu_custom_call.1} parent=1 // pred_check
      %p44 = pneg %p43
    $region23: #{tpu_custom_call.1} parent=1 // pred_check_branch
      %46 = sbr.rel (%p44) target = $region25
    $region24: #{tpu_custom_call.1} parent=1 // pred_region
      %vm47 = vcmask 261120
      %48 = vst.msk [vmem:[#allocation2] sm:$0xff] %vm47, 0.0
      %49 = vst.msk [vmem:[#allocation2 + $0x8] sm:$0xff] %vm47, 0.0
    $region25: #{tpu_custom_call.1} parent=1 // pred_fallthru
      _
    %v50 = vld [vmem:[#allocation2] sm:$0xff]
    %v51 = vld [vmem:[#allocation2 + $0x8] sm:$0xff]
    %v52 = vld [vmem:[#allocation3] sm:$0xff]
    %v53 = vld [vmem:[#allocation3 + $0x8] sm:$0xff]
    %v54 = vld [vmem:[#allocation6] sm:$0xff]
    %v55 = vld [vmem:[#allocation6 + $0x8] sm:$0xff]
    %v56 = vld [vmem:[#allocation6 + $0x10] sm:$0xff]
    %v57 = vld [vmem:[#allocation6 + $0x18] sm:$0xff]
    %vm58 = vcmask 261120
    %v60 = vsel %vm58, %v52, 0
    %v63 = vsel %vm58, %v53, 0
    %65 = vmatprep.subr.mxu0 0.0
    %66 = vmatpush1.msra.mxu0 0.0
    %67 = vmatprep.subr.mxu0 0.0
    %68 = vmatpush1.msra.mxu0 0.0
    %69 = vmatprep.subr.mxu0 0.0
    %70 = vmatpush1.msra.mxu0 0.0
    %71 = vmatprep.subr.mxu0 0.0
    %72 = vmatpush1.msra.mxu0 0.0
    %73 = vmatprep.subr.mxu0 0.0
    %74 = vmatpush1.msra.mxu0 0.0
    %75 = vmatprep.subr.mxu0 0.0
    %76 = vmatpush1.msra.mxu0 0.0
    %77 = vmatprep.subr.mxu0 0.0
    %78 = vmatpush1.msra.mxu0 0.0
    %79 = vmatprep.subr.mxu0 0.0
    %80 = vmatpush1.msra.mxu0 0.0
    %81 = vmatprep.subr.mxu0 0.0
    %82 = vmatpush1.msra.mxu0 0.0
    %83 = vmatprep.subr.mxu0 0.0
    %84 = vmatpush1.msra.mxu0 0.0
    %85 = vmatprep.subr.mxu0 0.0
    %86 = vmatpush1.msra.mxu0 0.0
    %87 = vmatprep.subr.mxu0 0.0
    %88 = vmatpush1.msra.mxu0 0.0
    %89 = vmatprep.subr.mxu0 0.0
    %90 = vmatpush1.msra.mxu0 %v57
    %91 = vmatprep.subr.mxu0 0.0
    %92 = vmatpush1.msra.mxu0 %v56
    %93 = vmatprep.subr.mxu0 0.0
    %94 = vmatpush1.msra.mxu0 %v55
    %95 = vmatprep.subr.mxu0 0.0
    %96 = vmatpush1.msra.mxu0 %v54
    %97 = vmatprep.subr.mxu0 0.0
    %98 = vmatpush2.msra.mxu0 0.0
    %99 = vmatprep.subr.mxu0 0.0
    %100 = vmatpush2.msra.mxu0 0.0
    %101 = vmatprep.subr.mxu0 0.0
    %102 = vmatpush2.msra.mxu0 0.0
    %103 = vmatprep.subr.mxu0 0.0
    %104 = vmatpush2.msra.mxu0 0.0
    %105 = vmatprep.subr.mxu0 0.0
    %106 = vmatpush2.msra.mxu0 0.0
    %107 = vmatprep.subr.mxu0 0.0
    %108 = vmatpush2.msra.mxu0 0.0
    %109 = vmatprep.subr.mxu0 0.0
    %110 = vmatpush2.msra.mxu0 0.0
    %111 = vmatprep.subr.mxu0 0.0
    %112 = vmatpush2.msra.mxu0 0.0
    %113 = vmatprep.subr.mxu0 0.0
    %114 = vmatpush2.msra.mxu0 0.0
    %115 = vmatprep.subr.mxu0 0.0
    %116 = vmatpush2.msra.mxu0 0.0
    %117 = vmatprep.subr.mxu0 0.0
    %118 = vmatpush2.msra.mxu0 0.0
    %119 = vmatprep.subr.mxu0 0.0
    %120 = vmatpush2.msra.mxu0 0.0
    %121 = vmatprep.subr.mxu0 0.0
    %122 = vmatpush2.msra.mxu0 0.0
    %123 = vmatprep.subr.mxu0 0.0
    %124 = vmatpush2.msra.mxu0 0.0
    %125 = vmatprep.subr.mxu0 0.0
    %126 = vmatpush2.msra.mxu0 0.0
    %127 = vmatprep.subr.mxu0 0.0
    %128 = vmatpush2.msra.mxu0 0.0
    %129 = vmatprep.mubr.f32.mxu0 0.0
    %130 = vmatmul.mubr.f32.gmra.mxu0 %v60
    %v131 = vpop.f32.mrf.mxu0
    %v132 = vadd.f32 0.0, %v131
    %v133 = vpop.f32.mrf.mxu0
    %134 = vmatprep.mubr.f32.mxu0 0.0
    %135 = vmatmul.mubr.f32.gmra.mxu0 %v63
    %v136 = vpop.f32.mrf.mxu0
    %v137 = vadd.f32 0.0, %v136
    %v138 = vpop.f32.mrf.mxu0
    %139 = vdwg.mxu0
    %v140 = vadd.f32 %v50, %v132
    %v141 = vadd.f32 %v51, %v137
    %142 = vst.msk [vmem:[#allocation2] sm:$0xff] %vm58, %v140
    %143 = vst.msk [vmem:[#allocation2 + $0x8] sm:$0xff] %vm58, %v141
    // Predicated region
    $region26: #{tpu_custom_call.1} parent=1 // pred_check
      %p144 = pneg %p43
    $region27: #{tpu_custom_call.1} parent=1 // pred_check_branch
      %146 = sbr.rel (%p144) target = $region29
    $region28: #{tpu_custom_call.1} parent=1 // pred_region
      %v147 = vld [vmem:[#allocation2] sm:$0xff]
      %v148 = vld [vmem:[#allocation2 + $0x8] sm:$0xff]
      %v149 = vld [vmem:[%s2] sm:$0x1]
      %v151 = vlaneseq
      %v152 = vshrl.u32 %v151, 7
      %v153 = vsub.s32 0, %v152
      %v154 = vrot.slane %v149, %v153
      %v156 = vadd.f32 %v147, %v154
      %v157 = vadd.f32 %v148, %v154
      %158 = vst.msk [vmem:[#allocation8] sm:$0xff] %vm58, %v156
      %159 = vst.msk [vmem:[#allocation8 + $0x8] sm:$0xff] %vm58, %v157
    $region29: #{tpu_custom_call.1} parent=1 // pred_fallthru
      _
    // Predicated region
    $region30: #{tpu_custom_call.1} parent=1 // pred_check
      _
    $region31: #{tpu_custom_call.1} parent=1 // pred_check_branch
      %161 = sbr.rel (0) target = $region33
    $region32: #{tpu_custom_call.1} parent=1 // pred_region
      %s163 = ssub.s32 256, 256
      %164 = vsyncadd [#allocation5], %s163
      %s165 = sshll.u32 [#allocation8], 4
      %s166 = int_to_ptr.vmem [resolvable:$true] %s165
      %171 = dma.vmem_to_hbm [thread:$0]  %s166, 256, %s3, [#allocation5], 128, 128, 8
    $region33: #{tpu_custom_call.1} parent=1 // pred_fallthru
      _
    // Predicated region
    $region34: #{tpu_custom_call.1} parent=1 // pred_check
      _
    $region35: #{tpu_custom_call.1} parent=1 // pred_check_branch
      %173 = sbr.rel (0) target = $region37
    $region36: #{tpu_custom_call.1} parent=1 // pred_region
      %174 = dma.done [#allocation5], 256
    $region37: #{tpu_custom_call.1} parent=1 // pred_fallthru
      _
    %175 = vsyncpa [#allocation4], 1
    %176 = vsyncpa [#allocation7], 1
    %177 = vsyncpa [#allocation5], 1

</llo_original>
